<compile_context>
chip_gen: v7x
topology: tpu7x:2x2x1
jax: 0.10.0
libtpu: 0.0.40
codegen_flags: <defaults>
</compile_context>

<pallas_src>
import functools
import math

import jax
import jax.numpy as jnp
from jax.experimental import pallas as pl
from jax.experimental.pallas import tpu as pltpu

# ArcFace hyper-parameters (module __init__ defaults)
S_SCALE = 30.0
MARGIN = 0.5
COS_M = math.cos(MARGIN)
SIN_M = math.sin(MARGIN)
TH = math.cos(math.pi - MARGIN)
MM = math.sin(math.pi - MARGIN) * MARGIN

# Padding value for padded class columns: after * s it stays finite in f32
# (and bf16) and exp() underflows to exactly 0, so padded columns never
# contribute to the softmax.
_NEG_FILL = -1e30


def _round_up(x, m):
    return (x + m - 1) // m * m


def _arcface_lse_kernel(n_real_rows, logits_ref, tgt_ref, scos_ref, out_ref,
                        m_sc, l_sc):
    """Grid = (batch_tiles, class_tiles); class axis = streaming online LSE.

    n_real_rows is the static (un-padded) batch size, closed over via partial.
    """
    i = pl.program_id(0)
    j = pl.program_id(1)

    @pl.when(j == 0)
    def _():
        m_sc[...] = jnp.full_like(m_sc, -jnp.inf)
        l_sc[...] = jnp.zeros_like(l_sc)

    cosine = logits_ref[...]                                   # (TB, TC) native dtype
    tb = cosine.shape[0]

    # --- plain online log-sum-exp over S * cosine (no target handling) ---
    # Max in the native dtype; only the (TB, 1) result is upcast.
    tile_max = jnp.max(cosine, axis=-1, keepdims=True).astype(jnp.float32) * S_SCALE
    m_new = jnp.maximum(m_sc[...], tile_max)
    alpha = jnp.exp(m_sc[...] - m_new)
    p = jnp.exp(cosine.astype(jnp.float32) * S_SCALE - m_new)  # recompute S*cos
    l_sc[...] = alpha * l_sc[...] + jnp.sum(p, axis=-1, keepdims=True)
    m_sc[...] = m_new

    @pl.when(j == pl.num_programs(1) - 1)
    def _():
        m = m_sc[...]                                          # (TB, 1)
        l = l_sc[...]                                          # (TB, 1)
        tgt = tgt_ref[...]                                     # (TB, 1) = S*phi(cos_t)
        s_cos = scos_ref[...]                                  # (TB, 1) = S*cos_t
        # Swap the un-margined target column term for the margined one.
        # s_cos <= m and tgt <= s_cos <= m, so both exps are <= 1; the clamp
        # guards the subtraction against f32 rounding.
        l_corr = jnp.maximum(l - jnp.exp(s_cos - m), 0.0) + jnp.exp(tgt - m)
        row_loss = m + jnp.log(l_corr) - tgt                   # (TB, 1)

        # Mask padded rows and emit a per-batch-tile partial sum, lane-dense.
        row_ids = i * tb + jax.lax.broadcasted_iota(jnp.int32, (tb, 1), 0)
        row_loss = jnp.where(row_ids < n_real_rows, row_loss, 0.0)
        tile_sum = jnp.sum(row_loss, axis=0, keepdims=True)    # (1, 1)
        out_ref[...] = jnp.broadcast_to(tile_sum, out_ref.shape)


def arcface_loss(logits, labels, *, batch_tile=256, class_tile=4096):
    """logits: (B, C) float (f32 or bf16), labels: (B,) int class indices.

    Returns the scalar ArcFace loss (already divided by 2, as in the module).
    Tiles are clamped to the padded problem, rounded to dtype-aware sublane
    multiples, and batch_tile is split so >= 2 batch tiles exist when possible
    (keeps both TensorCores busy on v7x).  The VMEM limit is capped against
    the actual chip's VMEM capacity (64 MiB/TC on v7x, 128 MiB on v5e/v6e).
    On HBM-bound v5e, feed bf16 logits; the kernel upcasts internally.
    """
    B, C = logits.shape
    labels = labels.astype(jnp.int32)

    # --- target extraction + ArcFace margin in the wrapper (B-element gather) ---
    cos_t = jnp.take_along_axis(logits.astype(jnp.float32), labels[:, None],
                                axis=1)                               # (B, 1)
    # clamp vs fp error when |cosine| marginally exceeds 1 (improvement over ref)
    sin_t = jnp.sqrt(jnp.maximum(1.0 - cos_t * cos_t, 0.0))
    phi_t = jnp.where(cos_t > TH, cos_t * COS_M - sin_t * SIN_M, cos_t - MM)
    tgt = phi_t * S_SCALE                                             # (B, 1)
    s_cos = cos_t * S_SCALE                                           # (B, 1)

    # --- tiling: dtype-aware sublane rounding; >= 2 batch tiles when possible ---
    itemsize = jnp.dtype(logits.dtype).itemsize
    sublane = {4: 8, 2: 16, 1: 32}.get(itemsize, 8)
    Bp0 = _round_up(B, sublane)
    batch_tile = max(sublane,
                     min(batch_tile, _round_up(pl.cdiv(Bp0, 2), sublane)))
    batch_tile = _round_up(batch_tile, sublane)
    class_tile = _round_up(min(class_tile, _round_up(C, 128)), 128)
    Bp = _round_up(B, batch_tile)
    Cp = _round_up(C, class_tile)

    # Pad: extra rows with zeros (masked in-kernel), extra class columns with
    # a huge negative so they never affect the softmax.
    if Bp > B:
        logits = jnp.pad(logits, ((0, Bp - B), (0, 0)))
        tgt = jnp.pad(tgt, ((0, Bp - B), (0, 0)))
        s_cos = jnp.pad(s_cos, ((0, Bp - B), (0, 0)))
    if Cp > C:
        logits = jnp.pad(logits, ((0, 0), (0, Cp - C)),
                         constant_values=_NEG_FILL)

    n_bt = Bp // batch_tile
    grid = (n_bt, Cp // class_tile)

    # --- VMEM budget (pipeline buffers + in-kernel f32 temporaries) ---
    vmem_bytes = (2 * batch_tile * class_tile * itemsize   # double-buffered logits
                  + 2 * batch_tile * class_tile * 4        # in-kernel f32 temporaries
                  + 2 * 2 * batch_tile * 4                 # tgt / s_cos (double-buffered)
                  + 2 * 8 * 128 * 4                        # output block
                  + 2 * batch_tile * 4                     # scratch (m, l)
                  + (2 << 20))                             # headroom
    cp_kwargs = dict(dimension_semantics=("parallel", "arbitrary"))
    if vmem_bytes > (16 << 20):
        try:
            cap = (pltpu.get_tpu_info().vmem_capacity_bytes * 3) // 4
        except Exception:
            cap = 48 << 20                                 # safe for v7x's 64 MiB/TC
        cp_kwargs["vmem_limit_bytes"] = int(min(vmem_bytes, cap))

    kernel = functools.partial(_arcface_lse_kernel, B)

    partials = pl.pallas_call(
        kernel,
        out_shape=jax.ShapeDtypeStruct((n_bt * 8, 128), jnp.float32),
        grid_spec=pltpu.PrefetchScalarGridSpec(
            num_scalar_prefetch=0,
            grid=grid,
            in_specs=[
                pl.BlockSpec((batch_tile, class_tile), lambda i, j: (i, j)),
                pl.BlockSpec((batch_tile, 1), lambda i, j: (i, 0)),
                pl.BlockSpec((batch_tile, 1), lambda i, j: (i, 0)),
            ],
            out_specs=pl.BlockSpec((8, 128), lambda i, j: (i, 0)),
            scratch_shapes=[pltpu.VMEM((batch_tile, 1), jnp.float32)] * 2,
        ),
        compiler_params=pltpu.CompilerParams(**cp_kwargs),
    )(logits, tgt, s_cos)

    # one partial sum per batch tile (replicated 8x128); mean over real rows, /2.
    return jnp.sum(partials[::8, 0]) * (0.5 / B)


def _reference(logits, labels):
    """Pure-JAX reference mirroring the PyTorch module."""
    cosine = logits.astype(jnp.float32)
    sine = jnp.sqrt(1.0 - cosine * cosine)
    phi = cosine * COS_M - sine * SIN_M
    phi = jnp.where(cosine > TH, phi, cosine - MM)
    one_hot = jax.nn.one_hot(labels, cosine.shape[-1], dtype=jnp.float32)
    output = (one_hot * phi + (1.0 - one_hot) * cosine) * S_SCALE
    logprobs = jax.nn.log_softmax(output, axis=-1)
    loss = jnp.mean(jnp.sum(-logprobs * one_hot, axis=-1))
    return loss / 2.0


if __name__ == "__main__":
    # Small, deliberately non-tile-aligned shapes so padding, the
    # (batch, class) grid and the finalize correction are all exercised.
    B, C = 12, 300

    key = jax.random.PRNGKey(0)
    k_logits, k_labels = jax.random.split(key)
    # cosine-similarity-like logits in (-1, 1) so the margin math is well defined
    logits = jax.random.uniform(
        k_logits, (B, C), dtype=jnp.float32, minval=-0.99, maxval=0.99
    )
    labels = jax.random.randint(k_labels, (B,), 0, C, dtype=jnp.int32)

    ref = jax.block_until_ready(_reference(logits, labels))

    # explicit small tiles -> grid (2, 3)
    loss_small = jax.block_until_ready(
        arcface_loss(logits, labels, batch_tile=8, class_tile=128)
    )
    assert jnp.allclose(loss_small, ref, atol=1e-3, rtol=1e-3), (loss_small, ref)

    # default tiles (clamped to the problem) -> grid (2, 1)
    loss_default = jax.block_until_ready(arcface_loss(logits, labels))
    assert jnp.allclose(loss_default, ref, atol=1e-3, rtol=1e-3), (loss_default, ref)

    print("KERNEL_OK")
</pallas_src>

<mosaic_0001>
module attributes {stable_mosaic.version = 11 : i64} {
  func.func @_arcface_lse_kernel(%arg0: i32, %arg1: i32, %arg2: memref<8x128xf32, #tpu.memory_space<vmem>>, %arg3: memref<8x1xf32, #tpu.memory_space<vmem>>, %arg4: memref<8x1xf32, #tpu.memory_space<vmem>>, %arg5: memref<8x128xf32, #tpu.memory_space<vmem>>, %arg6: memref<8x1xf32, #tpu.memory_space<vmem>>, %arg7: memref<8x1xf32, #tpu.memory_space<vmem>>) attributes {dimension_semantics = [#tpu.dimension_semantics<parallel>, #tpu.dimension_semantics<arbitrary>], iteration_bounds = array<i64: 2, 3>, scalar_prefetch = 0 : i64, scratch_operands = 2 : i64, tpu.core_type = #tpu.core_type<tc>, window_params = [{transform_indices = @transform_0, window_bounds = array<i64: 8, 128>}, {transform_indices = @transform_1, window_bounds = array<i64: 8, 1>}, {transform_indices = @transform_2, window_bounds = array<i64: 8, 1>}, {transform_indices = @transform_3, window_bounds = array<i64: 8, 128>}]} {
    %c0_i32 = arith.constant 0 : i32
    %0 = arith.cmpi eq, %arg1, %c0_i32 : i32
    %1 = arith.extui %0 : i1 to i32
    %c0_i32_0 = arith.constant 0 : i32
    %2 = arith.cmpi ne, %1, %c0_i32_0 : i32
    scf.if %2 {
      %cst_16 = arith.constant 0xFF800000 : f32
      %28 = vector.broadcast %cst_16 : f32 to vector<8x1xf32>
      %c0_17 = arith.constant 0 : index
      %c0_18 = arith.constant 0 : index
      %29 = vector.load %arg6[%c0_17, %c0_18] : memref<8x1xf32, #tpu.memory_space<vmem>>, vector<8x1xf32>
      tpu.vector_store %arg6[%c0_17, %c0_18], %28 {strides = array<i32>} : memref<8x1xf32, #tpu.memory_space<vmem>>, vector<8x1xf32>,
      %cst_19 = arith.constant 0.000000e+00 : f32
      %30 = vector.broadcast %cst_19 : f32 to vector<8x1xf32>
      %c0_20 = arith.constant 0 : index
      %c0_21 = arith.constant 0 : index
      %31 = vector.load %arg7[%c0_20, %c0_21] : memref<8x1xf32, #tpu.memory_space<vmem>>, vector<8x1xf32>
      tpu.vector_store %arg7[%c0_20, %c0_21], %30 {strides = array<i32>} : memref<8x1xf32, #tpu.memory_space<vmem>>, vector<8x1xf32>,
    } else {
    }
    %c0 = arith.constant 0 : index
    %c0_1 = arith.constant 0 : index
    %3 = vector.load %arg2[%c0, %c0_1] : memref<8x128xf32, #tpu.memory_space<vmem>>, vector<8x128xf32>
    %cst = arith.constant dense<0xFF800000> : vector<8xf32>
    %4 = vector.multi_reduction <maximumf>, %3, %cst [1] : vector<8x128xf32> to vector<8xf32>
    %5 = vector.shape_cast %4 : vector<8xf32> to vector<8x1xf32>
    %cst_2 = arith.constant 3.000000e+01 : f32
    %6 = vector.broadcast %cst_2 : f32 to vector<8x1xf32>
    %7 = arith.mulf %5, %6 : vector<8x1xf32>
    %c0_3 = arith.constant 0 : index
    %c0_4 = arith.constant 0 : index
    %8 = vector.load %arg6[%c0_3, %c0_4] : memref<8x1xf32, #tpu.memory_space<vmem>>, vector<8x1xf32>
    %9 = arith.maximumf %8, %7 : vector<8x1xf32>
    %c0_5 = arith.constant 0 : index
    %c0_6 = arith.constant 0 : index
    %10 = vector.load %arg6[%c0_5, %c0_6] : memref<8x1xf32, #tpu.memory_space<vmem>>, vector<8x1xf32>
    %11 = arith.subf %10, %9 : vector<8x1xf32>
    %12 = math.exp %11 : vector<8x1xf32>
    %cst_7 = arith.constant 3.000000e+01 : f32
    %13 = vector.broadcast %cst_7 : f32 to vector<8x128xf32>
    %14 = arith.mulf %3, %13 : vector<8x128xf32>
    %15 = vector.broadcast %9 : vector<8x1xf32> to vector<8x128xf32>
    %16 = arith.subf %14, %15 : vector<8x128xf32>
    %17 = math.exp %16 : vector<8x128xf32>
    %c0_8 = arith.constant 0 : index
    %c0_9 = arith.constant 0 : index
    %18 = vector.load %arg7[%c0_8, %c0_9] : memref<8x1xf32, #tpu.memory_space<vmem>>, vector<8x1xf32>
    %19 = arith.mulf %12, %18 : vector<8x1xf32>
    %cst_10 = arith.constant dense<0.000000e+00> : vector<8xf32>
    %20 = vector.multi_reduction <add>, %17, %cst_10 [1] : vector<8x128xf32> to vector<8xf32>
    %21 = vector.shape_cast %20 : vector<8xf32> to vector<8x1xf32>
    %22 = arith.addf %19, %21 : vector<8x1xf32>
    %c0_11 = arith.constant 0 : index
    %c0_12 = arith.constant 0 : index
    %23 = vector.load %arg7[%c0_11, %c0_12] : memref<8x1xf32, #tpu.memory_space<vmem>>, vector<8x1xf32>
    tpu.vector_store %arg7[%c0_11, %c0_12], %22 {strides = array<i32>} : memref<8x1xf32, #tpu.memory_space<vmem>>, vector<8x1xf32>,
    %c0_13 = arith.constant 0 : index
    %c0_14 = arith.constant 0 : index
    %24 = vector.load %arg6[%c0_13, %c0_14] : memref<8x1xf32, #tpu.memory_space<vmem>>, vector<8x1xf32>
    tpu.vector_store %arg6[%c0_13, %c0_14], %9 {strides = array<i32>} : memref<8x1xf32, #tpu.memory_space<vmem>>, vector<8x1xf32>,
    %c2_i32 = arith.constant 2 : i32
    %25 = arith.cmpi eq, %arg1, %c2_i32 : i32
    %26 = arith.extui %25 : i1 to i32
    %c0_i32_15 = arith.constant 0 : i32
    %27 = arith.cmpi ne, %26, %c0_i32_15 : i32
    scf.if %27 {
      %c0_16 = arith.constant 0 : index
      %c0_17 = arith.constant 0 : index
      %28 = vector.load %arg6[%c0_16, %c0_17] : memref<8x1xf32, #tpu.memory_space<vmem>>, vector<8x1xf32>
      %c0_18 = arith.constant 0 : index
      %c0_19 = arith.constant 0 : index
      %29 = vector.load %arg7[%c0_18, %c0_19] : memref<8x1xf32, #tpu.memory_space<vmem>>, vector<8x1xf32>
      %c0_20 = arith.constant 0 : index
      %c0_21 = arith.constant 0 : index
      %30 = vector.load %arg3[%c0_20, %c0_21] : memref<8x1xf32, #tpu.memory_space<vmem>>, vector<8x1xf32>
      %c0_22 = arith.constant 0 : index
      %c0_23 = arith.constant 0 : index
      %31 = vector.load %arg4[%c0_22, %c0_23] : memref<8x1xf32, #tpu.memory_space<vmem>>, vector<8x1xf32>
      %32 = arith.subf %31, %28 : vector<8x1xf32>
      %33 = math.exp %32 : vector<8x1xf32>
      %34 = arith.subf %29, %33 : vector<8x1xf32>
      %cst_24 = arith.constant 0.000000e+00 : f32
      %35 = vector.broadcast %cst_24 : f32 to vector<8x1xf32>
      %36 = arith.maximumf %34, %35 : vector<8x1xf32>
      %37 = arith.subf %30, %28 : vector<8x1xf32>
      %38 = math.exp %37 : vector<8x1xf32>
      %39 = arith.addf %36, %38 : vector<8x1xf32>
      %40 = math.log %39 : vector<8x1xf32>
      %41 = arith.addf %28, %40 : vector<8x1xf32>
      %42 = arith.subf %41, %30 : vector<8x1xf32>
      %c8_i32 = arith.constant 8 : i32
      %43 = arith.muli %arg0, %c8_i32 : i32
      %44 = tpu.iota {dimensions = array<i32: 0>} : vector<8x1xi32>
      %45 = vector.broadcast %43 : i32 to vector<8x1xi32>
      %46 = arith.addi %45, %44 : vector<8x1xi32>
      %c12_i32 = arith.constant 12 : i32
      %47 = vector.broadcast %c12_i32 : i32 to vector<8x1xi32>
      %48 = arith.cmpi slt, %46, %47 : vector<8x1xi32>
      %cst_25 = arith.constant 0.000000e+00 : f32
      %49 = vector.broadcast %cst_25 : f32 to vector<8x1xf32>
      %50 = arith.select %48, %42, %49 : vector<8x1xi1>, vector<8x1xf32>
      %cst_26 = arith.constant dense<0.000000e+00> : vector<1xf32>
      %51 = vector.multi_reduction <add>, %50, %cst_26 [0] : vector<8x1xf32> to vector<1xf32>
      %52 = vector.shape_cast %51 : vector<1xf32> to vector<1x1xf32>
      %53 = vector.shape_cast %52 : vector<1x1xf32> to vector<1x1xf32>
      %54 = vector.broadcast %53 : vector<1x1xf32> to vector<8x128xf32>
      %c0_27 = arith.constant 0 : index
      %c0_28 = arith.constant 0 : index
      %55 = vector.load %arg5[%c0_27, %c0_28] : memref<8x128xf32, #tpu.memory_space<vmem>>, vector<8x128xf32>
      tpu.vector_store %arg5[%c0_27, %c0_28], %54 {strides = array<i32>} : memref<8x128xf32, #tpu.memory_space<vmem>>, vector<8x128xf32>,
    } else {
    }
    return
  }
  func.func @transform_0(%arg0: i32, %arg1: i32) -> (i32, i32) {
    %c0_i32 = arith.constant 0 : i32
    return %arg0, %arg1 : i32, i32
  }
  func.func @transform_1(%arg0: i32, %arg1: i32) -> (i32, i32) {
    %c0_i32 = arith.constant 0 : i32
    %c0_i32_0 = arith.constant 0 : i32
    return %arg0, %c0_i32 : i32, i32
  }
  func.func @transform_2(%arg0: i32, %arg1: i32) -> (i32, i32) {
    %c0_i32 = arith.constant 0 : i32
    %c0_i32_0 = arith.constant 0 : i32
    return %arg0, %c0_i32 : i32, i32
  }
  func.func @transform_3(%arg0: i32, %arg1: i32) -> (i32, i32) {
    %c0_i32 = arith.constant 0 : i32
    %c0_i32_0 = arith.constant 0 : i32
    return %arg0, %c0_i32 : i32, i32
  }
}

</mosaic_0001>

<llo_original>
// kernel: tpu_custom_call.1
$region0: #{tpu_custom_call.1}
  #allocation0 [shape = 'u32[]', space=smem, size = 0x4, offset = 0x4, fixed_abs, tag = 'smem constant byte address 0x4 - core index']
  #allocation1 [shape = 'u32[144,128]{1,0:T(1,128)}', space=vmem, size = 0x12000, scoped, tag = 'internal scratch']
  #allocation2 [shape = 'f32[8,1]{1,0:T(8,128)}', space=vmem, size = 0x1000, scoped, tag = 'scratch operand']
  #allocation3 [shape = 'f32[8,1]{1,0:T(8,128)}', space=vmem, size = 0x1000, scoped, tag = 'scratch operand']
  %s0 = inlined_call_operand.hbm [shape: f32[16,384], index: 0, kind: input, shape index: {}]
  %s1 = inlined_call_operand.vmem [shape: f32[16,1], index: 1, kind: input, shape index: {}]
  %s2 = inlined_call_operand.vmem [shape: f32[16,1], index: 2, kind: input, shape index: {}]
  %s3 = inlined_call_operand.hbm [shape: f32[16,128], index: 3, kind: output, shape index: {}]
  %s4 = sld [smem:[#allocation0]]
  $region57: #{tpu_custom_call.1} parent=0
    _
  %s6 = ssub.s32 1, %s4
  %s7 = scalar_select 0, %s6, %s4
  $region1: #{tpu_custom_call.1} parent=0
    #allocation4 [shape = 'u8[8192]{0}', space=vmem, size = 0x2000, scoped, tag = 'input window, operand 0']
    #allocation5 [shape = 's32[2]{0}', space=sflag, size = 0x8, scoped, tag = 'scoped memory for tpu_custom_call.1']
    #allocation6 [shape = 's32[2]{0}', space=sflag, size = 0x8, scoped, tag = 'scoped memory for tpu_custom_call.1']
    #allocation7 [shape = 'u8[8192]{0}', space=vmem, size = 0x2000, scoped, tag = 'output window, operand 0']
    %8 = vsyncpa [#allocation5], 0
    %s9 = scalar_lea.sflag [#allocation5], 1
    %10 = vsyncpa %s9, 0
    %11 = vsyncpa [#allocation6], 0
    %s12 = scalar_lea.sflag [#allocation6], 1
    %13 = vsyncpa %s12, 0
    loop: start=0, step=1, limit=8
    $region2: #{tpu_custom_call.1} parent=1 // loop_pre_header
      _
    $region3: #{tpu_custom_call.1} parent=1 // loop_header
      %s15 = sphi 0, %s19
      %p16 = scmp.ge.s32.totalorder %s15, 8
      %s22 = sphi 0, %s34
      %s23 = sphi 0, %s30
      %s24 = sphi 0, %s22
      %s25 = sphi 0, %s23
      %s26 = sphi 0, %s24
      %s27 = sphi 0, %s25
      %s39 = sphi 0, %s41
      %s42 = sphi 0, %s39
      %s43 = sphi 0, %s42
      %s59 = sphi 0, %s43
      %s65 = sphi 0, %s67
      %s68 = sphi 0, %s65
      %s69 = sphi 0, %s68
      %s85 = sphi 0, %s69
      %s91 = sphi 0, %s93
      %s94 = sphi 0, %s91
      %s95 = sphi 0, %s94
      %s111 = sphi 0, %s95
      %s117 = sphi 0, %s119
      %s120 = sphi 0, %s117
      %s121 = sphi 0, %s120
      %s137 = sphi 0, %s121
    $region4: #{tpu_custom_call.1} parent=1 // loop_header_branch
      %18 = sbr.rel (%p16) target = $region8
    $region5: #{tpu_custom_call.1} parent=1 // loop_body
      %s20 = ssub.s32 %s15, 1
      %s21 = ssub.s32 %s15, 2
      %s28 = sadd.s32 1, %s23
      %p29 = scmp.ge.s32.totalorder %s28, 3
      %s30 = scalar_select %p29, 0, %s28
      %s31 = sadd.s32 1, %s22
      %s32 = scalar_select %p29, %s31, %s22
      %p33 = scmp.ge.s32.totalorder %s32, 2
      %s34 = scalar_select %p33, 0, %s32
      %s35 = ssub.s32 %s22, %s34
      %s36 = ssub.s32 %s23, %s30
      %s37 = sor.u32 %s35, %s36
      %p38 = scmp.eq.s32.totalorder %s37, 0
      %s40 = sadd.s32 %s39, 1
      %s41 = scalar_select %p38, %s39, %s40
      %p44 = pneg %p38
      %p45 = scmp.eq.s32.totalorder %s15, 5
      %p46 = por %p44, %p45
      %p47 = scmp.ne.s32.totalorder %s39, %s42
      %p48 = scmp.eq.s32.totalorder %s15, 0
      %p49 = por %p47, %p48
      %p50 = scmp.ne.s32.totalorder %s39, %s42
      %p51 = scmp.eq.s32.totalorder %s20, 5
      %p52 = por %p50, %p51
      %p53 = scmp.ne.s32.totalorder %s42, %s43
      %p54 = scmp.eq.s32.totalorder %s20, 0
      %p55 = por %p53, %p54
      %p56 = scmp.ne.s32.totalorder %s42, %s43
      %p57 = scmp.eq.s32.totalorder %s21, 5
      %p58 = por %p56, %p57
      %p60 = scmp.ne.s32.totalorder %s43, %s59
      %p61 = scmp.eq.s32.totalorder %s21, 0
      %p62 = por %p60, %p61
      %s63 = ssub.s32 %s22, %s34
      %p64 = scmp.eq.s32.totalorder %s63, 0
      %s66 = sadd.s32 %s65, 1
      %s67 = scalar_select %p64, %s65, %s66
      %p70 = pneg %p64
      %p71 = scmp.eq.s32.totalorder %s15, 5
      %p72 = por %p70, %p71
      %p73 = scmp.ne.s32.totalorder %s65, %s68
      %p74 = scmp.eq.s32.totalorder %s15, 0
      %p75 = por %p73, %p74
      %p76 = scmp.ne.s32.totalorder %s65, %s68
      %p77 = scmp.eq.s32.totalorder %s20, 5
      %p78 = por %p76, %p77
      %p79 = scmp.ne.s32.totalorder %s68, %s69
      %p80 = scmp.eq.s32.totalorder %s20, 0
      %p81 = por %p79, %p80
      %p82 = scmp.ne.s32.totalorder %s68, %s69
      %p83 = scmp.eq.s32.totalorder %s21, 5
      %p84 = por %p82, %p83
      %p86 = scmp.ne.s32.totalorder %s69, %s85
      %p87 = scmp.eq.s32.totalorder %s21, 0
      %p88 = por %p86, %p87
      %s89 = ssub.s32 %s22, %s34
      %p90 = scmp.eq.s32.totalorder %s89, 0
      %s92 = sadd.s32 %s91, 1
      %s93 = scalar_select %p90, %s91, %s92
      %p96 = pneg %p90
      %p97 = scmp.eq.s32.totalorder %s15, 5
      %p98 = por %p96, %p97
      %p99 = scmp.ne.s32.totalorder %s91, %s94
      %p100 = scmp.eq.s32.totalorder %s15, 0
      %p101 = por %p99, %p100
      %p102 = scmp.ne.s32.totalorder %s91, %s94
      %p103 = scmp.eq.s32.totalorder %s20, 5
      %p104 = por %p102, %p103
      %p105 = scmp.ne.s32.totalorder %s94, %s95
      %p106 = scmp.eq.s32.totalorder %s20, 0
      %p107 = por %p105, %p106
      %p108 = scmp.ne.s32.totalorder %s94, %s95
      %p109 = scmp.eq.s32.totalorder %s21, 5
      %p110 = por %p108, %p109
      %p112 = scmp.ne.s32.totalorder %s95, %s111
      %p113 = scmp.eq.s32.totalorder %s21, 0
      %p114 = por %p112, %p113
      %s115 = ssub.s32 %s22, %s34
      %p116 = scmp.eq.s32.totalorder %s115, 0
      %s118 = sadd.s32 %s117, 1
      %s119 = scalar_select %p116, %s117, %s118
      %p122 = pneg %p116
      %p123 = scmp.eq.s32.totalorder %s15, 5
      %p124 = por %p122, %p123
      %p125 = scmp.ne.s32.totalorder %s117, %s120
      %p126 = scmp.eq.s32.totalorder %s15, 0
      %p127 = por %p125, %p126
      %p128 = scmp.ne.s32.totalorder %s117, %s120
      %p129 = scmp.eq.s32.totalorder %s20, 5
      %p130 = por %p128, %p129
      %p131 = scmp.ne.s32.totalorder %s120, %s121
      %p132 = scmp.eq.s32.totalorder %s20, 0
      %p133 = por %p131, %p132
      %p134 = scmp.ne.s32.totalorder %s120, %s121
      %p135 = scmp.eq.s32.totalorder %s21, 5
      %p136 = por %p134, %p135
      %p138 = scmp.ne.s32.totalorder %s121, %s137
      %p139 = scmp.eq.s32.totalorder %s21, 0
      %p140 = por %p138, %p139
      %p141 = scmp.le.s32.totalorder 1, %s15
      %p142 = scmp.lt.s32.totalorder %s15, 7
      %p143 = pnand %p141, %p142
      %p144 = pneg %p143
      // Predicated region
      $region9: #{tpu_custom_call.1} parent=5 // pred_check
        _
      $region10: #{tpu_custom_call.1} parent=5 // pred_check_branch
        %146 = sbr.rel (%p143) target = $region12
      $region11: #{tpu_custom_call.1} parent=5 // pred_region
        %s147 = ssub.s32 %s15, 1
      $region12: #{tpu_custom_call.1} parent=5 // pred_fallthru
        _
      %p148 = scmp.lt.s32.totalorder %s15, 6
      // Predicated region
      $region13: #{tpu_custom_call.1} parent=5 // pred_check
        %p149 = pneg %p148
      $region14: #{tpu_custom_call.1} parent=5 // pred_check_branch
        %151 = sbr.rel (%p149) target = $region16
      $region15: #{tpu_custom_call.1} parent=5 // pred_region
        // Predicated region
        $region17: #{tpu_custom_call.1} parent=15 // pred_check
          %p152 = pneg %p49
        $region18: #{tpu_custom_call.1} parent=15 // pred_check_branch
          %154 = sbr.rel (%p152) target = $region20
        $region19: #{tpu_custom_call.1} parent=15 // pred_region
          %s155 = sand.u32 %s39, 1
          %s156 = scalar_lea.sflag [#allocation5], %s155
          %s157 = sand.u32 %s39, 1
          %s158 = smul.addr %s157, 8
          %s159 = scalar_lea.vmem [#allocation4], %s158
          %s161 = ssub.s32 128, 128
          %162 = vsyncadd %s156, %s161
          %s163 = smul.addr %s22, 3
          %s164 = sadd.s32 %s23, %s163
          %s165 = smul.addr %s164, 128
          %s166 = scalar_lea.hbm %s0, %s165
          %s168 = sshll.u32 %s159, 4
          %s169 = int_to_ptr.vmem [resolvable:$true] %s168
          %171 = dma.hbm_to_vmem [thread:$0]  %s166, 128, %s169, %s156
        $region20: #{tpu_custom_call.1} parent=15 // pred_fallthru
          _
        // Predicated region
        $region21: #{tpu_custom_call.1} parent=15 // pred_check
          %p172 = pneg %p75
        $region22: #{tpu_custom_call.1} parent=15 // pred_check_branch
          %174 = sbr.rel (%p172) target = $region24
        $region23: #{tpu_custom_call.1} parent=15 // pred_region
          %p175 = scmp.lt.s32.totalorder %s22, 1
          %s176 = scalar_select %p175, %s22, 1
          %s177 = smul.addr %s176, 8
          %s178 = scalar_lea.vmem %s1, %s177
        $region24: #{tpu_custom_call.1} parent=15 // pred_fallthru
          _
        // Predicated region
        $region25: #{tpu_custom_call.1} parent=15 // pred_check
          %p179 = pneg %p101
        $region26: #{tpu_custom_call.1} parent=15 // pred_check_branch
          %181 = sbr.rel (%p179) target = $region28
        $region27: #{tpu_custom_call.1} parent=15 // pred_region
          %p182 = scmp.lt.s32.totalorder %s22, 1
          %s183 = scalar_select %p182, %s22, 1
          %s184 = smul.addr %s183, 8
          %s185 = scalar_lea.vmem %s2, %s184
        $region28: #{tpu_custom_call.1} parent=15 // pred_fallthru
          _
      $region16: #{tpu_custom_call.1} parent=5 // pred_fallthru
        _
      %p186 = scmp.le.s32.totalorder 1, %s15
      %p187 = scmp.lt.s32.totalorder %s15, 7
      %p188 = pnand %p186, %p187
      %p189 = pneg %p188
      // Predicated region
      $region29: #{tpu_custom_call.1} parent=5 // pred_check
        _
      $region30: #{tpu_custom_call.1} parent=5 // pred_check_branch
        %191 = sbr.rel (%p188) target = $region32
      $region31: #{tpu_custom_call.1} parent=5 // pred_region
        %s192 = ssub.s32 %s15, 1
        %s193 = sand.u32 %s42, 1
        %s194 = scalar_lea.sflag [#allocation5], %s193
        %s195 = sand.u32 %s42, 1
        %s196 = smul.addr %s195, 8
        %s197 = scalar_lea.vmem [#allocation4], %s196
        // Predicated region
        $region33: #{tpu_custom_call.1} parent=31 // pred_check
          %p198 = pneg %p55
        $region34: #{tpu_custom_call.1} parent=31 // pred_check_branch
          %200 = sbr.rel (%p198) target = $region36
        $region35: #{tpu_custom_call.1} parent=31 // pred_region
          %201 = dma.done %s194, 128
        $region36: #{tpu_custom_call.1} parent=31 // pred_fallthru
          _
        %s202 = sand.u32 %s42, 1
        %s203 = scalar_lea.sflag [#allocation5], %s202
        %s204 = sand.u32 %s42, 1
        %s205 = smul.addr %s204, 8
        %s206 = scalar_lea.vmem [#allocation4], %s205
        %p207 = pneg %p55
        %p208 = pneg %p52
        %p209 = scmp.lt.s32.totalorder %s24, 1
        %s210 = scalar_select %p209, %s24, 1
        %s211 = smul.addr %s210, 8
        %s212 = scalar_lea.vmem %s1, %s211
        %p213 = pneg %p81
        %p214 = pneg %p78
        %p215 = scmp.lt.s32.totalorder %s24, 1
        %s216 = scalar_select %p215, %s24, 1
        %s217 = smul.addr %s216, 8
        %s218 = scalar_lea.vmem %s2, %s217
        %p219 = pneg %p107
        %p220 = pneg %p104
        %p221 = pneg %p133
        %p222 = pneg %p130
        %s223 = sand.u32 %s120, 1
        %s224 = scalar_lea.sflag [#allocation6], %s223
        %s225 = sand.u32 %s120, 1
        %s226 = smul.addr %s225, 8
        %s227 = scalar_lea.vmem [#allocation7], %s226
        %p228 = scmp.lt.s32.totalorder %s24, 1
        %s229 = scalar_select %p228, %s24, 1
        %s230 = smul.addr %s229, 8
        %s231 = scalar_lea.vmem %s1, %s230
        %p232 = scmp.lt.s32.totalorder %s24, 1
        %s233 = scalar_select %p232, %s24, 1
        %s234 = smul.addr %s233, 8
        %s235 = scalar_lea.vmem %s2, %s234
        %p236 = scmp.eq.s32.totalorder %s25, 0
        // Predicated region
        $region37: #{tpu_custom_call.1} parent=31 // pred_check
          %p237 = pneg %p236
        $region38: #{tpu_custom_call.1} parent=31 // pred_check_branch
          %239 = sbr.rel (%p237) target = $region40
        $region39: #{tpu_custom_call.1} parent=31 // pred_region
          %vm240 = vcmask 7168
          %241 = vst.msk [vmem:[#allocation2] sm:$0xff] %vm240, -inf
          %242 = vst.msk [vmem:[#allocation3] sm:$0xff] %vm240, 0.0
        $region40: #{tpu_custom_call.1} parent=31 // pred_fallthru
          _
        %v243 = vld [vmem:[%s197] sm:$0xff]
        %244 = vmax.xlane.f32.xlu0 %v243
        %v245 = vpop.xlane.xlu0 %244
        %v246 = vmul.f32 %v245, 30.0
        %v247 = vld [vmem:[#allocation2] sm:$0xff]
        %v248 = vmax.f32 %v247, %v246
        %v249 = vsub.f32 %v247, %v248
        %v250 = vmul.f32 %v249, 1.442695
        %v251 = vpow.pop %v250
        %v252 = vmul.f32 %v243, 30.0
        %254 = vset.pattern.permute.xlu0 0
        %255 = vperm.xlu0 %254, %v248
        %v256 = vpop.permute.xlu0 %255
        %v258 = vsub.f32 %v252, %v256
        %v259 = vmul.f32 %v258, 1.442695
        %v260 = vpow.pop %v259
        %v261 = vld [vmem:[#allocation3] sm:$0xff]
        %v262 = vmul.f32 %v251, %v261
        %263 = vadd.xlane.f32.xlu0 %v260
        %v264 = vpop.xlane.xlu0 %263
        %v265 = vadd.f32 %v262, %v264
        %vm266 = vcmask 7168
        %267 = vst.msk [vmem:[#allocation3] sm:$0xff] %vm266, %v265
        %268 = vst.msk [vmem:[#allocation2] sm:$0xff] %vm266, %v248
        %p269 = scmp.eq.s32.totalorder %s25, 2
        // Predicated region
        $region41: #{tpu_custom_call.1} parent=31 // pred_check
          %p270 = pneg %p269
        $region42: #{tpu_custom_call.1} parent=31 // pred_check_branch
          %272 = sbr.rel (%p270) target = $region44
        $region43: #{tpu_custom_call.1} parent=31 // pred_region
          %v273 = vld [vmem:[#allocation2] sm:$0xff]
          %v274 = vld [vmem:[#allocation3] sm:$0xff]
          %v275 = vld [vmem:[%s231] sm:$0xff]
          %v276 = vld [vmem:[%s235] sm:$0xff]
          %v277 = vsub.f32 %v276, %v273
          %v278 = vmul.f32 %v277, 1.442695
          %v279 = vpow.pop %v278
          %v280 = vsub.f32 %v274, %v279
          %v281 = vmax.f32 %v280, 0.0
          %v282 = vsub.f32 %v275, %v273
          %v283 = vmul.f32 %v282, 1.442695
          %v284 = vpow.pop %v283
          %v285 = vadd.f32 %v281, %v284
          %v286 = vlog2.pop %v285
          %v287 = vmul.f32 %v286, 0.6931472
          %v288 = vadd.f32 %v273, %v287
          %v289 = vsub.f32 %v288, %v275
          %s290 = smul.u32 %s24, 8
          %v291 = vlaneseq
          %v292 = vshrl.u32 %v291, 7
          %v293 = vstv %s290
          %v294 = vadd.s32 %v293, %v292
          %vm295 = vcmp.lt.s32.totalorder %v294, 12
          %v296 = vsel %vm295, %v289, 0.0
          %v297 = vsel %vm266, %v296, 0.0
          %v298 = vrot.slane %v297, 4
          %v299 = vadd.f32 %v297, %v298
          %v300 = vrot.slane %v299, 2
          %v301 = vadd.f32 %v299, %v300
          %v302 = vrot.slane %v301, 1
          %v303 = vadd.f32 %v301, %v302
          %305 = vset.pattern.permute.xlu0 0
          %306 = vperm.xlu0 %305, %v303
          %v307 = vpop.permute.xlu0 %306
          %309 = vst [vmem:[%s227] sm:$0xff] %v307
        $region44: #{tpu_custom_call.1} parent=31 // pred_fallthru
          _
        %s310 = sand.u32 %s120, 1
        %s311 = scalar_lea.sflag [#allocation6], %s310
        %s312 = sand.u32 %s120, 1
        %s313 = smul.addr %s312, 8
        %s314 = scalar_lea.vmem [#allocation7], %s313
        // Predicated region
        $region45: #{tpu_custom_call.1} parent=31 // pred_check
          %p315 = pneg %p130
        $region46: #{tpu_custom_call.1} parent=31 // pred_check_branch
          %317 = sbr.rel (%p315) target = $region48
        $region47: #{tpu_custom_call.1} parent=31 // pred_region
          %s319 = ssub.s32 128, 128
          %320 = vsyncadd %s311, %s319
          %s321 = smul.addr %s24, 128
          %s322 = scalar_lea.hbm %s3, %s321
          %s324 = sshll.u32 %s314, 4
          %s325 = int_to_ptr.vmem [resolvable:$true] %s324
          %327 = dma.vmem_to_hbm [thread:$0]  %s325, 128, %s322, %s311
        $region48: #{tpu_custom_call.1} parent=31 // pred_fallthru
          _
      $region32: #{tpu_custom_call.1} parent=5 // pred_fallthru
        _
      %p328 = scmp.le.s32.totalorder 2, %s15
      // Predicated region
      $region49: #{tpu_custom_call.1} parent=5 // pred_check
        %p329 = pneg %p328
      $region50: #{tpu_custom_call.1} parent=5 // pred_check_branch
        %331 = sbr.rel (%p329) target = $region52
      $region51: #{tpu_custom_call.1} parent=5 // pred_region
        %s332 = ssub.s32 %s15, 2
        // Predicated region
        $region53: #{tpu_custom_call.1} parent=51 // pred_check
          %p333 = pneg %p136
        $region54: #{tpu_custom_call.1} parent=51 // pred_check_branch
          %335 = sbr.rel (%p333) target = $region56
        $region55: #{tpu_custom_call.1} parent=51 // pred_region
          %s336 = sand.u32 %s121, 1
          %s337 = scalar_lea.sflag [#allocation6], %s336
          %s338 = sand.u32 %s121, 1
          %s339 = smul.addr %s338, 8
          %s340 = scalar_lea.vmem [#allocation7], %s339
          %341 = dma.done %s337, 128
        $region56: #{tpu_custom_call.1} parent=51 // pred_fallthru
          _
      $region52: #{tpu_custom_call.1} parent=5 // pred_fallthru
        _
    $region6: #{tpu_custom_call.1} parent=1 // loop_footer
      %s19 = sadd.s32 1, %s15
    $region7: #{tpu_custom_call.1} parent=1 // loop_footer_branch
      %14 = sbr.rel target = $region3
    $region8: #{tpu_custom_call.1} parent=1 // loop_exit
      _
    %342 = vsyncpa [#allocation5], 1
    %s343 = scalar_lea.sflag [#allocation5], 1
    %344 = vsyncpa %s343, 1
    %345 = vsyncpa [#allocation6], 1
    %s346 = scalar_lea.sflag [#allocation6], 1
    %347 = vsyncpa %s346, 1

</llo_original>
